<compile_context>
chip_gen: v7x
topology: tpu7x:2x2x1
jax: 0.10.0
libtpu: 0.0.40
codegen_flags: <defaults>
</compile_context>

<pallas_src>
import functools

import jax
import jax.numpy as jnp
from jax.experimental import pallas as pl
from jax.experimental.pallas import tpu as pltpu

NUM_CLASSES = 33
ALPHA = 0.25
GAMMA = 2          # integer gamma -> lax.integer_pow (matches torch.pow(x, 2))
SIZE_AVERAGE = True


def _round_up(a, b):
    return ((a + b - 1) // b) * b


def _focal_loss_kernel(preds_ref, side_ref, out_ref, *, gamma):
    # preds_ref: (C, TN) native dtype, class-major.  side_ref: (2, TN) f32
    # with row 0 = pre-gathered label logit, row 1 = per-sample alpha.
    x = preds_ref[...].astype(jnp.float32)                 # (C, TN)
    x_label = side_ref[0:1, :]                             # (1, TN)
    alpha_g = side_ref[1:2, :]                             # (1, TN)

    # log-softmax pieces: class reductions over the sublane axis, tail math
    # fully lane-dense.
    m = jnp.max(x, axis=0, keepdims=True)                              # (1, TN)
    lse = jnp.log(jnp.sum(jnp.exp(x - m), axis=0, keepdims=True))      # (1, TN)

    logpt = x_label - m - lse                                          # (1, TN)
    pt = jnp.exp(logpt)

    # -alpha * (1 - pt)^gamma * log(pt).  pt may round marginally above 1;
    # harmless for integer gamma, clamp for non-integer gamma.
    one_minus_pt = 1.0 - pt
    if not float(gamma).is_integer():
        one_minus_pt = jnp.maximum(one_minus_pt, 0.0)
    per_sample = -alpha_g * (one_minus_pt ** gamma) * logpt            # (1, TN)

    # Padded columns carry alpha = 0 and finite logits, so they contribute 0.
    partial = jnp.sum(per_sample)
    # Lane-dense, fully aligned (1, 8, 128) store of this block's partial sum.
    out_ref[...] = jnp.full(out_ref.shape, partial, dtype=out_ref.dtype)


def focal_loss(preds, labels, alpha_vec, *, gamma=GAMMA,
               size_average=SIZE_AVERAGE, tile_n=4096):
    """preds: [B, C] or [B, N, C] (any float dtype); labels: [B] or [B, N]
    with values in [0, C); alpha_vec: [C]."""
    c = preds.shape[-1]
    preds2 = preds.reshape(-1, c)                       # keep native dtype
    n = preds2.shape[0]

    labels_flat = labels.reshape(-1).astype(jnp.int32)

    # Pre-gather the label logit and per-sample alpha in XLA (tiny gathers),
    # so the kernel never builds a one-hot or does a wide masked reduce.
    x_label = jnp.take_along_axis(preds2, labels_flat[:, None], axis=1)[:, 0]
    x_label = x_label.astype(jnp.float32)
    alpha_g = alpha_vec.astype(jnp.float32)[labels_flat]

    # Tile width: lane-aligned, large enough to amortize per-step overhead,
    # and >= 2 blocks when n allows it (v7x megacore).
    tile_n = _round_up(max(int(tile_n), 128), 128)
    n_pad_min = _round_up(n, 128)
    if 256 <= n_pad_min <= tile_n:
        tn = _round_up(-(-n // 2), 128)                 # aim for 2 blocks
    else:
        tn = min(tile_n, n_pad_min)
    n_pad = _round_up(n, tn)
    num_blocks = n_pad // tn

    # Class-major layout + zero padding (alpha = 0 -> zero loss contribution).
    preds_t = jnp.pad(preds2.T, ((0, 0), (0, n_pad - n)))              # (C, n_pad)
    side = jnp.pad(jnp.stack([x_label, alpha_g]), ((0, 0), (0, n_pad - n)))

    kernel = functools.partial(_focal_loss_kernel, gamma=gamma)
    partials = pl.pallas_call(
        kernel,
        out_shape=jax.ShapeDtypeStruct((num_blocks, 8, 128), jnp.float32),
        grid=(num_blocks,),
        in_specs=[
            pl.BlockSpec((c, tn), lambda i: (0, i)),    # preds tile (class-major)
            pl.BlockSpec((2, tn), lambda i: (0, i)),    # fused x_label / alpha tile
        ],
        out_specs=pl.BlockSpec((1, 8, 128), lambda i: (i, 0, 0)),
        compiler_params=pltpu.CompilerParams(
            dimension_semantics=("parallel",),          # megacore shardable
        ),
    )(preds_t, side)

    total = jnp.sum(partials[:, 0, 0])
    return total / n if size_average else total


def _focal_loss_ref(preds, labels, alpha_vec, gamma=GAMMA,
                    size_average=SIZE_AVERAGE):
    c = preds.shape[-1]
    preds2 = preds.reshape(-1, c).astype(jnp.float32)
    labels2 = labels.reshape(-1).astype(jnp.int32)
    logsoft = jax.nn.log_softmax(preds2, axis=1)
    logpt = jnp.take_along_axis(logsoft, labels2[:, None], axis=1)[:, 0]
    pt = jnp.exp(logpt)
    a = alpha_vec[labels2]
    loss = -a * ((1.0 - pt) ** gamma) * logpt
    return jnp.mean(loss) if size_average else jnp.sum(loss)


if __name__ == "__main__":
    key = jax.random.PRNGKey(0)
    k1, k2, k3, k4 = jax.random.split(key, 4)

    # Deterministic parameters matching __init__: alpha=0.25 scalar ->
    # [0.25, 0.75, ...], num_classes=33, gamma=2, size_average=True.
    alpha_vec = jnp.full((NUM_CLASSES,), 1.0 - ALPHA, dtype=jnp.float32)
    alpha_vec = alpha_vec.at[0].set(ALPHA)

    # Case 1: small detection-style input [B, N, C] = [2, 4, 33] (one tile,
    # padded 8 -> 128 columns with zero-alpha padding).
    B, N = 2, 4
    preds = jax.random.normal(k1, (B, N, NUM_CLASSES), dtype=jnp.float32)
    labels = jax.random.randint(k2, (B, N), 0, NUM_CLASSES, dtype=jnp.int32)
    loss = jax.block_until_ready(focal_loss(preds, labels, alpha_vec))
    ref = _focal_loss_ref(preds, labels, alpha_vec)
    assert jnp.allclose(loss, ref, rtol=1e-5, atol=1e-6), (loss, ref)

    # Case 2: multi-block path (Ntot=300 -> tn=256, n_pad=512, 2 blocks) with
    # bf16 logits streamed in their native dtype.
    B2, N2 = 2, 150
    preds2 = jax.random.normal(k3, (B2, N2, NUM_CLASSES),
                               dtype=jnp.float32).astype(jnp.bfloat16)
    labels2 = jax.random.randint(k4, (B2, N2), 0, NUM_CLASSES, dtype=jnp.int32)
    loss2 = jax.block_until_ready(focal_loss(preds2, labels2, alpha_vec))
    ref2 = _focal_loss_ref(preds2, labels2, alpha_vec)
    assert jnp.allclose(loss2, ref2, rtol=1e-3, atol=1e-5), (loss2, ref2)

    # Case 3: sum-reduction variant (size_average=False), f32, 2 blocks.
    loss3 = jax.block_until_ready(
        focal_loss(preds, labels, alpha_vec, size_average=False))
    ref3 = _focal_loss_ref(preds, labels, alpha_vec, size_average=False)
    assert jnp.allclose(loss3, ref3, rtol=1e-5, atol=1e-6), (loss3, ref3)

    print("KERNEL_OK")
</pallas_src>

<mosaic_0001>
module attributes {stable_mosaic.version = 11 : i64} {
  func.func @_focal_loss_kernel(%arg0: i32, %arg1: memref<33x128xf32, #tpu.memory_space<vmem>>, %arg2: memref<2x128xf32, #tpu.memory_space<vmem>>, %arg3: memref<1x8x128xf32, #tpu.memory_space<vmem>>) attributes {dimension_semantics = [#tpu.dimension_semantics<parallel>], iteration_bounds = array<i64: 1>, scalar_prefetch = 0 : i64, scratch_operands = 0 : i64, tpu.core_type = #tpu.core_type<tc>, window_params = [{transform_indices = @transform_0, window_bounds = array<i64: 33, 128>}, {transform_indices = @transform_1, window_bounds = array<i64: 2, 128>}, {transform_indices = @transform_2, window_bounds = array<i64: 1, 8, 128>}]} {
    %c0 = arith.constant 0 : index
    %c0_0 = arith.constant 0 : index
    %0 = vector.load %arg1[%c0, %c0_0] : memref<33x128xf32, #tpu.memory_space<vmem>>, vector<33x128xf32>
    %c0_1 = arith.constant 0 : index
    %c0_2 = arith.constant 0 : index
    %1 = vector.load %arg2[%c0_1, %c0_2] : memref<2x128xf32, #tpu.memory_space<vmem>>, vector<1x128xf32>
    %c1 = arith.constant 1 : index
    %c0_3 = arith.constant 0 : index
    %2 = vector.load %arg2[%c1, %c0_3] : memref<2x128xf32, #tpu.memory_space<vmem>>, vector<1x128xf32>
    %cst = arith.constant dense<0xFF800000> : vector<128xf32>
    %3 = vector.multi_reduction <maximumf>, %0, %cst [0] : vector<33x128xf32> to vector<128xf32>
    %4 = vector.shape_cast %3 : vector<128xf32> to vector<1x128xf32>
    %5 = vector.broadcast %4 : vector<1x128xf32> to vector<33x128xf32>
    %6 = arith.subf %0, %5 : vector<33x128xf32>
    %7 = math.exp %6 : vector<33x128xf32>
    %cst_4 = arith.constant dense<0.000000e+00> : vector<128xf32>
    %8 = vector.multi_reduction <add>, %7, %cst_4 [0] : vector<33x128xf32> to vector<128xf32>
    %9 = vector.shape_cast %8 : vector<128xf32> to vector<1x128xf32>
    %10 = math.log %9 : vector<1x128xf32>
    %11 = arith.subf %1, %4 : vector<1x128xf32>
    %12 = arith.subf %11, %10 : vector<1x128xf32>
    %13 = math.exp %12 : vector<1x128xf32>
    %cst_5 = arith.constant 1.000000e+00 : f32
    %14 = vector.broadcast %cst_5 : f32 to vector<1x128xf32>
    %15 = arith.subf %14, %13 : vector<1x128xf32>
    %cst_6 = arith.constant 0.000000e+00 : f32
    %16 = vector.broadcast %cst_6 : f32 to vector<1x128xf32>
    %17 = arith.subf %16, %2 : vector<1x128xf32>
    %18 = arith.mulf %15, %15 : vector<1x128xf32>
    %19 = arith.mulf %17, %18 : vector<1x128xf32>
    %20 = arith.mulf %19, %12 : vector<1x128xf32>
    %21 = vector.shape_cast %20 : vector<1x128xf32> to vector<1x1x128xf32>
    %cst_7 = arith.constant dense<0.000000e+00> : vector<1xf32>
    %22 = vector.multi_reduction <add>, %21, %cst_7 [1, 2] : vector<1x1x128xf32> to vector<1xf32>
    %23 = vector.shape_cast %22 : vector<1xf32> to vector<1x1x1xf32>
    %24 = vector.extract %23[0, 0, 0] : f32 from vector<1x1x1xf32>
    %25 = vector.broadcast %24 : f32 to vector<1x8x128xf32>
    %c0_8 = arith.constant 0 : index
    %c0_9 = arith.constant 0 : index
    %c0_10 = arith.constant 0 : index
    %26 = vector.load %arg3[%c0_8, %c0_9, %c0_10] : memref<1x8x128xf32, #tpu.memory_space<vmem>>, vector<1x8x128xf32>
    tpu.vector_store %arg3[%c0_8, %c0_9, %c0_10], %25 {strides = array<i32>} : memref<1x8x128xf32, #tpu.memory_space<vmem>>, vector<1x8x128xf32>,
    return
  }
  func.func @transform_0(%arg0: i32) -> (i32, i32) {
    %c0_i32 = arith.constant 0 : i32
    %c0_i32_0 = arith.constant 0 : i32
    return %c0_i32, %arg0 : i32, i32
  }
  func.func @transform_1(%arg0: i32) -> (i32, i32) {
    %c0_i32 = arith.constant 0 : i32
    %c0_i32_0 = arith.constant 0 : i32
    return %c0_i32, %arg0 : i32, i32
  }
  func.func @transform_2(%arg0: i32) -> (i32, i32, i32) {
    %c0_i32 = arith.constant 0 : i32
    %c0_i32_0 = arith.constant 0 : i32
    %c0_i32_1 = arith.constant 0 : i32
    return %arg0, %c0_i32, %c0_i32_0 : i32, i32, i32
  }
}

</mosaic_0001>

<llo_original>
// kernel: tpu_custom_call.1
$region0: #{tpu_custom_call.1}
  #allocation0 [shape = 'u32[]', space=smem, size = 0x4, offset = 0x4, fixed_abs, tag = 'smem constant byte address 0x4 - core index']
  #allocation1 [shape = 'u32[144,128]{1,0:T(1,128)}', space=vmem, size = 0x12000, scoped, tag = 'internal scratch']
  %s0 = inlined_call_operand.hbm [shape: f32[33,128], index: 0, kind: input, shape index: {}]
  %s1 = inlined_call_operand.vmem [shape: f32[2,128], index: 1, kind: input, shape index: {}]
  %s2 = inlined_call_operand.hbm [shape: f32[1,8,128], index: 2, kind: output, shape index: {}]
  %s3 = sld [smem:[#allocation0]]
  $region22: #{tpu_custom_call.1} parent=0
    _
  %s5 = ssub.s32 1, %s3
  %s6 = scalar_select 0, %s5, %s3
  $region1: #{tpu_custom_call.1} parent=0
    #allocation2 [shape = 'u8[20480]{0}', space=vmem, size = 0x5000, scoped, tag = 'input window, operand 0, single buffered']
    #allocation3 [shape = 's32[1]{0}', space=sflag, size = 0x4, scoped, tag = 'scoped memory for tpu_custom_call.1']
    #allocation4 [shape = 's32[1]{0}', space=sflag, size = 0x4, scoped, tag = 'scoped memory for tpu_custom_call.1']
    #allocation5 [shape = 'u8[4096]{0}', space=vmem, size = 0x1000, scoped, tag = 'output window, operand 0, single buffered']
    %7 = vsyncpa [#allocation3], 0
    %8 = vsyncpa [#allocation4], 0
    // Predicated region
    $region2: #{tpu_custom_call.1} parent=1 // pred_check
      _
    $region3: #{tpu_custom_call.1} parent=1 // pred_check_branch
      %10 = sbr.rel (0) target = $region5
    $region4: #{tpu_custom_call.1} parent=1 // pred_region
      %s12 = ssub.s32 640, 640
      %13 = vsyncadd [#allocation3], %s12
      %s14 = sshll.u32 [#allocation2], 4
      %s15 = int_to_ptr.vmem [resolvable:$true] %s14
      %20 = dma.hbm_to_vmem [thread:$0]  %s0, 640, %s15, [#allocation3], 128, 128, 8
    $region5: #{tpu_custom_call.1} parent=1 // pred_fallthru
      _
    // Predicated region
    $region6: #{tpu_custom_call.1} parent=1 // pred_check
      _
    $region7: #{tpu_custom_call.1} parent=1 // pred_check_branch
      %22 = sbr.rel (0) target = $region9
    $region8: #{tpu_custom_call.1} parent=1 // pred_region
      _
    $region9: #{tpu_custom_call.1} parent=1 // pred_fallthru
      _
    // Predicated region
    $region10: #{tpu_custom_call.1} parent=1 // pred_check
      _
    $region11: #{tpu_custom_call.1} parent=1 // pred_check_branch
      %24 = sbr.rel (0) target = $region13
    $region12: #{tpu_custom_call.1} parent=1 // pred_region
      %25 = dma.done [#allocation3], 640
    $region13: #{tpu_custom_call.1} parent=1 // pred_fallthru
      _
    %v26 = vld [vmem:[#allocation2] sm:$0xff]
    %v27 = vld [vmem:[#allocation2 + $0x8] sm:$0xff]
    %v28 = vld [vmem:[#allocation2 + $0x10] sm:$0xff]
    %v29 = vld [vmem:[#allocation2 + $0x18] sm:$0xff]
    %v30 = vld [vmem:[#allocation2 + $0x20] sm:$0x1]
    %v31 = vld [vmem:[%s1] sm:$0x1]
    %v32 = vld [vmem:[%s1 + $0x1] sm:$0x1]
    %vm33 = vcmask 1040384
    %v34 = vsel %vm33, %v30, -inf
    %v35 = vmax.f32 %v26, %v34
    %v36 = vmax.f32 %v35, %v27
    %v37 = vmax.f32 %v28, %v29
    %v38 = vmax.f32 %v36, %v37
    %v39 = vrot.slane %v38, 4
    %v40 = vmax.f32 %v38, %v39
    %v41 = vrot.slane %v40, 2
    %v42 = vmax.f32 %v40, %v41
    %v43 = vrot.slane %v42, 1
    %v44 = vmax.f32 %v42, %v43
    %v45 = vsub.f32 %v26, %v44
    %v46 = vsub.f32 %v27, %v44
    %v47 = vsub.f32 %v28, %v44
    %v48 = vsub.f32 %v29, %v44
    %v49 = vsub.f32 %v30, %v44
    %v50 = vmul.f32 %v45, 1.442695
    %v51 = vpow.pop %v50
    %v52 = vmul.f32 %v46, 1.442695
    %v53 = vpow.pop %v52
    %v54 = vmul.f32 %v47, 1.442695
    %v55 = vpow.pop %v54
    %v56 = vmul.f32 %v48, 1.442695
    %v57 = vpow.pop %v56
    %v58 = vmul.f32 %v49, 1.442695
    %v59 = vpow.pop %v58
    %v60 = vadd.f32 %v51, %v53
    %v61 = vadd.f32 %v60, %v55
    %v62 = vadd.f32 %v61, %v57
    %v63 = vsel %vm33, %v59, 0.0
    %v64 = vadd.f32 %v62, %v63
    %v65 = vrot.slane %v64, 4
    %v66 = vadd.f32 %v64, %v65
    %v67 = vrot.slane %v66, 2
    %v68 = vadd.f32 %v66, %v67
    %v69 = vrot.slane %v68, 1
    %v70 = vadd.f32 %v68, %v69
    %v71 = vlog2.pop %v70
    %v72 = vmul.f32 %v71, 0.6931472
    %v73 = vsub.f32 %v31, %v44
    %v74 = vsub.f32 %v73, %v72
    %v75 = vmul.f32 %v74, 1.442695
    %v76 = vpow.pop %v75
    %v77 = vsub.f32 1.0, %v76
    %v78 = vsub.f32 0.0, %v32
    %v79 = vmul.f32 %v77, %v77
    %v80 = vmul.f32 %v78, %v79
    %v81 = vmul.f32 %v80, %v74
    %v82 = vsel %vm33, %v81, 0.0
    %83 = vadd.xlane.f32.xlu0 %v82
    %v84 = vpop.xlane.xlu0 %83
    %v85 = vrot.slane %v84, 4
    %v86 = vadd.f32 %v84, %v85
    %v87 = vrot.slane %v86, 2
    %v88 = vadd.f32 %v86, %v87
    %v89 = vrot.slane %v88, 1
    %v90 = vadd.f32 %v88, %v89
    %s91 = vtos %v90
    %v92 = vstv %s91
    %93 = vst [vmem:[#allocation5] sm:$0xff] %v92
    // Predicated region
    $region14: #{tpu_custom_call.1} parent=1 // pred_check
      _
    $region15: #{tpu_custom_call.1} parent=1 // pred_check_branch
      %95 = sbr.rel (0) target = $region17
    $region16: #{tpu_custom_call.1} parent=1 // pred_region
      %s97 = ssub.s32 128, 128
      %98 = vsyncadd [#allocation4], %s97
      %s100 = sshll.u32 [#allocation5], 4
      %s101 = int_to_ptr.vmem [resolvable:$true] %s100
      %103 = dma.vmem_to_hbm [thread:$0]  %s101, 128, %s2, [#allocation4]
    $region17: #{tpu_custom_call.1} parent=1 // pred_fallthru
      _
    // Predicated region
    $region18: #{tpu_custom_call.1} parent=1 // pred_check
      _
    $region19: #{tpu_custom_call.1} parent=1 // pred_check_branch
      %105 = sbr.rel (0) target = $region21
    $region20: #{tpu_custom_call.1} parent=1 // pred_region
      %106 = dma.done [#allocation4], 128
    $region21: #{tpu_custom_call.1} parent=1 // pred_fallthru
      _
    %107 = vsyncpa [#allocation3], 1
    %108 = vsyncpa [#allocation4], 1

</llo_original>
